<compile_context>
chip_gen: v6e
topology: v6e:2x2x1
jax: 0.10.0
libtpu: 0.0.40
codegen_flags: <defaults>
</compile_context>

<pallas_src>
import jax
import jax.numpy as jnp
from jax.experimental import pallas as pl
from jax.experimental.pallas import tpu as pltpu


def _round_up(x, m):
    return ((x + m - 1) // m) * m


def _vmem_capacity_bytes():
    # Per-TensorCore VMEM: 128 MiB on v5e/v6e, 64 MiB on v7x.
    try:
        return int(pltpu.get_tpu_info().vmem_capacity_bytes)
    except Exception:  # conservative fallback (v7x-sized)
        return 64 << 20


def _patch_embed_kernel(x_ref, w_ref, b_ref, o_ref, acc_ref):
    # x_ref: (TM, TK) bf16   w_ref: (TK, Hp) bf16   b_ref: (1, Hp) f32
    # o_ref: (TM, Hp) bf16   acc_ref: (TM, Hp) f32 scratch
    k = pl.program_id(1)

    @pl.when(k == 0)
    def _():
        acc_ref[...] = jnp.zeros_like(acc_ref)

    acc_ref[...] += jnp.dot(x_ref[...], w_ref[...],
                            preferred_element_type=jnp.float32)

    @pl.when(k == pl.num_programs(1) - 1)
    def _():
        o_ref[...] = (acc_ref[...] + b_ref[...]).astype(o_ref.dtype)


def patch_embed_matmul(x_patches, w_flat, bias, *, out_dtype=jnp.bfloat16,
                       tm_max=512, xla_fallback_rows=0):
    """x_patches: (M, K), w_flat: (K, H), bias: (H,) -> (M, H) in out_dtype."""
    M, K = x_patches.shape
    K2, H = w_flat.shape
    assert K == K2
    out_bytes = jnp.dtype(out_dtype).itemsize

    # Optional tiny-problem fast path (pallas_call fixed overhead dominates there).
    # Disabled by default so the Pallas path is always exercised.
    if M < xla_fallback_rows:
        acc = jnp.dot(x_patches.astype(jnp.bfloat16), w_flat.astype(jnp.bfloat16),
                      preferred_element_type=jnp.float32)
        return (acc + bias.astype(jnp.float32)).astype(out_dtype)

    # Lane-dense output: pad hidden to a multiple of 128 so stores are full vst.
    H_pad = _round_up(H, 128)

    # ---- generation-aware VMEM budget --------------------------------------
    vmem_cap = _vmem_capacity_bytes()
    tile_budget = int(vmem_cap * 0.6)   # ~38 MiB on v7x, ~77 MiB on v5e/v6e
    limit_cap = int(vmem_cap * 0.75)    # ~48 MiB on v7x, ~96 MiB on v5e/v6e

    def vmem_need(tm, tk):
        return (2 * tm * tk * 2                 # x tiles (bf16, double-buffered)
                + 2 * tk * H_pad * 2            # weight panel (bf16, double-buffered)
                + 2 * 8 * H_pad * 4             # bias (one sublane tile per buffer)
                + 2 * tm * H_pad * out_bytes    # output tiles
                + 2 * tm * H_pad * 4)           # f32 accumulator + matmul result temp

    # ---- M tile -------------------------------------------------------------
    if M < 128:
        tm = _round_up(max(M, 1), 16)           # bf16 sublane packing (16, not 8)
    else:
        tm = min(tm_max, _round_up(M, 128), 512)
        if M >= 256:
            # ensure the "parallel" M axis has >= 2 steps so both v7x TCs get work
            tm = min(tm, _round_up(pl.cdiv(M, 2), 128))
        tm = max(tm, 128)
        while tm > 128 and vmem_need(tm, min(K, 2048)) > tile_budget:
            tm -= 128
    nm = pl.cdiv(M, tm)                          # ragged last tile: no jnp.pad copy

    # ---- K tile (keeps tm large independent of K) ----------------------------
    if vmem_need(tm, K) <= tile_budget:
        tk = K
    else:
        tk = 0
        cand = (K // 128) * 128
        while cand >= 128:
            if K % cand == 0 and vmem_need(tm, cand) <= tile_budget:
                tk = cand
                break
            cand -= 128
        if tk == 0:
            # TODO(synk): pad K when it has no 128-multiple divisor; realistic
            # configs (K = C * P^3, P in {4, 8, 16}) always have one.
            tk = K
    nk = K // tk if K % tk == 0 else 1
    if nk * tk != K:
        tk, nk = K, 1

    # ---- operands -------------------------------------------------------------
    # astype is a no-op when the wrapper already cast to bf16 upstream.
    xp = x_patches.astype(jnp.bfloat16)
    wp = w_flat.astype(jnp.bfloat16)
    bp = bias.astype(jnp.float32).reshape(1, H)
    if H_pad != H:
        wp = jnp.pad(wp, ((0, 0), (0, H_pad - H)))
        bp = jnp.pad(bp, ((0, 0), (0, H_pad - H)))

    cost = pl.CostEstimate(                      # true sizes, not padded
        flops=int(2 * M * K * H),
        transcendentals=0,
        bytes_accessed=int(M * K * 2 + K * H * 2 + H * 4 + M * H * out_bytes),
    )
    vmem_limit = int(min(limit_cap, max(vmem_need(tm, tk) + (16 << 20), 32 << 20)))

    # TODO(synk): single-buffer the grid-invariant weight/bias blocks
    # (pipeline_mode=pl.Buffered(1)) if VMEM ever becomes the limiter; with
    # K-tiling the resident panel already fits comfortably on all generations.
    # TODO(synk): 4-row lane-packing (block-diagonal weight) to shrink the padded-H
    # writeback further and fill the 256-wide MXU on v6e/v7x.
    out = pl.pallas_call(
        _patch_embed_kernel,
        out_shape=jax.ShapeDtypeStruct((M, H_pad), out_dtype),
        grid_spec=pltpu.PrefetchScalarGridSpec(
            num_scalar_prefetch=0,
            grid=(nm, nk),
            in_specs=[
                pl.BlockSpec((tm, tk), lambda i, k: (i, k)),
                pl.BlockSpec((tk, H_pad), lambda i, k: (k, 0)),
                pl.BlockSpec((1, H_pad), lambda i, k: (0, 0)),
            ],
            out_specs=pl.BlockSpec((tm, H_pad), lambda i, k: (i, 0)),
            scratch_shapes=[pltpu.VMEM((tm, H_pad), jnp.float32)],
        ),
        compiler_params=pltpu.CompilerParams(
            dimension_semantics=("parallel", "arbitrary"),
            vmem_limit_bytes=vmem_limit,
        ),
        cost_estimate=cost,
    )(xp, wp, bp)
    return out[:, :H]


def mri_tmae_patch_embeddings(mri_values, conv_weight, conv_bias, patch_size):
    """
    mri_values : (B, C, S, S, S)
    conv_weight: (hidden, C, P, P, P)   (PyTorch Conv3d weight layout)
    conv_bias  : (hidden,)
    returns    : (B, num_patches, hidden) in mri_values.dtype
    """
    B, C, S1, S2, S3 = mri_values.shape
    P = patch_size
    assert S1 % P == 0 and S2 % P == 0 and S3 % P == 0
    X, Y, Z = S1 // P, S2 // P, S3 // P
    num_patches = X * Y * Z
    hidden = conv_weight.shape[0]
    K = C * P * P * P

    # Cast to bf16 BEFORE the 8-D relayout: the transpose is a full HBM round trip
    # of the activation and is the dominant bytes term of the whole op.
    # TODO(synk): fuse this relayout into the kernel (memory_space=pl.ANY input +
    # make_async_copy of (C, P, P, S) slabs) to remove the extra XLA pass entirely.
    x = mri_values.astype(jnp.bfloat16)
    # rearrange('b c (x px) (y py) (z pz) -> (b x y z) (c px py pz)')
    x = x.reshape(B, C, X, P, Y, P, Z, P)
    x = jnp.transpose(x, (0, 2, 4, 6, 1, 3, 5, 7))          # (B, X, Y, Z, C, P, P, P)
    x_patches = x.reshape(B * num_patches, K)

    # Conv3d(kernel=stride=P) on a P^3 patch == dense projection.
    w_flat = conv_weight.reshape(hidden, K).T.astype(jnp.bfloat16)   # (K, hidden)

    out = patch_embed_matmul(x_patches, w_flat, conv_bias)  # (M, hidden) bf16
    # rearrange('(b s) e -> b s e', b=B); cast back to the activation dtype.
    return out.astype(mri_values.dtype).reshape(B, num_patches, hidden)


if __name__ == "__main__":
    def run_case(key, B, C, S, P, H):
        K = C * P ** 3
        k_x, k_w, k_b = jax.random.split(key, 3)
        mri_values = jax.random.normal(k_x, (B, C, S, S, S), dtype=jnp.float32)
        conv_weight = (jax.random.normal(k_w, (H, C, P, P, P), dtype=jnp.float32)
                       * (1.0 / jnp.sqrt(K)))
        conv_bias = jax.random.normal(k_b, (H,), dtype=jnp.float32) * 0.01

        out = mri_tmae_patch_embeddings(mri_values, conv_weight, conv_bias, P)
        out = jax.block_until_ready(out)
        num_patches = (S // P) ** 3
        assert out.shape == (B, num_patches, H), out.shape

        # Reference: same bf16 operand rounding, f32 accumulation.
        xr = mri_values.reshape(B, C, S // P, P, S // P, P, S // P, P)
        xr = jnp.transpose(xr, (0, 2, 4, 6, 1, 3, 5, 7)).reshape(-1, K)
        xr_b = xr.astype(jnp.bfloat16).astype(jnp.float32)
        wr_b = conv_weight.reshape(H, K).T.astype(jnp.bfloat16).astype(jnp.float32)
        ref = (xr_b @ wr_b + conv_bias).reshape(out.shape)
        # Kernel stores bf16 -> allow one bf16 ulp of slack on top of operand rounding.
        err = float(jnp.max(jnp.abs(out.astype(jnp.float32) - ref)))
        assert jnp.allclose(out.astype(jnp.float32), ref, atol=2e-2, rtol=2e-2), err

    root = jax.random.PRNGKey(0)
    k1, k2 = jax.random.split(root)
    # Shipped toy config: mri_size=16, patch_size=8, C=1, hidden=32 -> 8 patches.
    run_case(k1, B=2, C=1, S=16, P=8, H=32)
    # Larger case exercising multiple parallel M tiles + ragged tail (M = 5*64 = 320).
    run_case(k2, B=5, C=2, S=32, P=8, H=32)

    print("KERNEL_OK")
</pallas_src>

<mosaic_0001>
module attributes {stable_mosaic.version = 11 : i64} {
  func.func @_patch_embed_kernel(%arg0: i32, %arg1: i32, %arg2: memref<16x512xbf16, #tpu.memory_space<vmem>>, %arg3: memref<512x128xbf16, #tpu.memory_space<vmem>>, %arg4: memref<1x128xf32, #tpu.memory_space<vmem>>, %arg5: memref<16x128xbf16, #tpu.memory_space<vmem>>, %arg6: memref<16x128xf32, #tpu.memory_space<vmem>>) attributes {dimension_semantics = [#tpu.dimension_semantics<parallel>, #tpu.dimension_semantics<arbitrary>], iteration_bounds = array<i64: 1, 1>, scalar_prefetch = 0 : i64, scratch_operands = 1 : i64, tpu.core_type = #tpu.core_type<tc>, window_params = [{transform_indices = @transform_0, window_bounds = array<i64: 16, 512>}, {transform_indices = @transform_1, window_bounds = array<i64: 512, 128>}, {pipeline_mode = #tpu.pipeline_mode<synchronous>, transform_indices = @transform_2, window_bounds = array<i64: 1, 128>}, {transform_indices = @transform_3, window_bounds = array<i64: 16, 128>}]} {
    %c0_i32 = arith.constant 0 : i32
    %0 = arith.cmpi eq, %arg1, %c0_i32 : i32
    %1 = arith.extui %0 : i1 to i32
    %c0_i32_0 = arith.constant 0 : i32
    %2 = arith.cmpi ne, %1, %c0_i32_0 : i32
    scf.if %2 {
      %cst_10 = arith.constant 0.000000e+00 : f32
      %12 = vector.broadcast %cst_10 : f32 to vector<16x128xf32>
      %c0_11 = arith.constant 0 : index
      %c0_12 = arith.constant 0 : index
      %13 = vector.load %arg6[%c0_11, %c0_12] : memref<16x128xf32, #tpu.memory_space<vmem>>, vector<16x128xf32>
      tpu.vector_store %arg6[%c0_11, %c0_12], %12 {strides = array<i32>} : memref<16x128xf32, #tpu.memory_space<vmem>>, vector<16x128xf32>,
    } else {
    }
    %c0 = arith.constant 0 : index
    %c0_1 = arith.constant 0 : index
    %3 = vector.load %arg6[%c0, %c0_1] : memref<16x128xf32, #tpu.memory_space<vmem>>, vector<16x128xf32>
    %c0_2 = arith.constant 0 : index
    %c0_3 = arith.constant 0 : index
    %4 = vector.load %arg2[%c0_2, %c0_3] : memref<16x512xbf16, #tpu.memory_space<vmem>>, vector<16x512xbf16>
    %c0_4 = arith.constant 0 : index
    %c0_5 = arith.constant 0 : index
    %5 = vector.load %arg3[%c0_4, %c0_5] : memref<512x128xbf16, #tpu.memory_space<vmem>>, vector<512x128xbf16>
    %cst = arith.constant dense<0.000000e+00> : vector<16x128xf32>
    %6 = tpu.matmul %4, %5, %cst {dimension_numbers = #tpu.dot_dimension_numbers<[1], [0], [0], [1], [0, 0, 1, 1], [], []>} : vector<16x512xbf16>, vector<512x128xbf16>, vector<16x128xf32> -> vector<16x128xf32>
    %7 = arith.addf %3, %6 : vector<16x128xf32>
    %c0_6 = arith.constant 0 : index
    %c0_7 = arith.constant 0 : index
    %8 = vector.load %arg6[%c0_6, %c0_7] : memref<16x128xf32, #tpu.memory_space<vmem>>, vector<16x128xf32>
    tpu.vector_store %arg6[%c0_6, %c0_7], %7 {strides = array<i32>} : memref<16x128xf32, #tpu.memory_space<vmem>>, vector<16x128xf32>,
    %c0_i32_8 = arith.constant 0 : i32
    %9 = arith.cmpi eq, %arg1, %c0_i32_8 : i32
    %10 = arith.extui %9 : i1 to i32
    %c0_i32_9 = arith.constant 0 : i32
    %11 = arith.cmpi ne, %10, %c0_i32_9 : i32
    scf.if %11 {
      %c0_10 = arith.constant 0 : index
      %c0_11 = arith.constant 0 : index
      %12 = vector.load %arg6[%c0_10, %c0_11] : memref<16x128xf32, #tpu.memory_space<vmem>>, vector<16x128xf32>
      %c0_12 = arith.constant 0 : index
      %c0_13 = arith.constant 0 : index
      %13 = vector.load %arg4[%c0_12, %c0_13] : memref<1x128xf32, #tpu.memory_space<vmem>>, vector<1x128xf32>
      %14 = vector.broadcast %13 : vector<1x128xf32> to vector<16x128xf32>
      %15 = arith.addf %12, %14 : vector<16x128xf32>
      %16 = arith.truncf %15 : vector<16x128xf32> to vector<16x128xbf16>
      %c0_14 = arith.constant 0 : index
      %c0_15 = arith.constant 0 : index
      %17 = vector.load %arg5[%c0_14, %c0_15] : memref<16x128xbf16, #tpu.memory_space<vmem>>, vector<16x128xbf16>
      tpu.vector_store %arg5[%c0_14, %c0_15], %16 {strides = array<i32>} : memref<16x128xbf16, #tpu.memory_space<vmem>>, vector<16x128xbf16>,
    } else {
    }
    return
  }
  func.func @transform_0(%arg0: i32, %arg1: i32) -> (i32, i32) {
    %c0_i32 = arith.constant 0 : i32
    return %arg0, %arg1 : i32, i32
  }
  func.func @transform_1(%arg0: i32, %arg1: i32) -> (i32, i32) {
    %c0_i32 = arith.constant 0 : i32
    %c0_i32_0 = arith.constant 0 : i32
    return %arg1, %c0_i32 : i32, i32
  }
  func.func @transform_2(%arg0: i32, %arg1: i32) -> (i32, i32) {
    %c0_i32 = arith.constant 0 : i32
    %c0_i32_0 = arith.constant 0 : i32
    %c0_i32_1 = arith.constant 0 : i32
    return %c0_i32, %c0_i32_0 : i32, i32
  }
  func.func @transform_3(%arg0: i32, %arg1: i32) -> (i32, i32) {
    %c0_i32 = arith.constant 0 : i32
    %c0_i32_0 = arith.constant 0 : i32
    return %arg0, %c0_i32 : i32, i32
  }
}

</mosaic_0001>

<llo_original>
// kernel: tpu_custom_call.1
$region0: #{tpu_custom_call.1}
  #allocation0 [shape = 'u32[]', space=smem, size = 0x4, offset = 0x4, fixed_abs, tag = 'smem constant byte address 0x4 - core index']
  #allocation1 [shape = 'u32[144,128]{1,0:T(1,128)}', space=vmem, size = 0x12000, scoped, tag = 'internal scratch']
  #allocation2 [shape = 'f32[16,128]{1,0:T(8,128)}', space=vmem, size = 0x2000, scoped, tag = 'scratch operand']
  %s0 = inlined_call_operand.hbm [shape: bf16[16,512], index: 0, kind: input, shape index: {}]
  %s1 = inlined_call_operand.hbm [shape: bf16[512,128], index: 1, kind: input, shape index: {}]
  %s2 = inlined_call_operand.vmem [shape: f32[1,128], index: 2, kind: input, shape index: {}]
  %s3 = inlined_call_operand.hbm [shape: bf16[16,128], index: 3, kind: output, shape index: {}]
  %s4 = sld [smem:[#allocation0]]
  $region38: #{tpu_custom_call.1} parent=0
    _
  %s6 = ssub.s32 1, %s4
  %s7 = scalar_select 0, %s6, %s4
  $region1: #{tpu_custom_call.1} parent=0
    #allocation3 [shape = 'u8[16384]{0}', space=vmem, size = 0x4000, scoped, tag = 'input window, operand 0, single buffered']
    #allocation4 [shape = 's32[1]{0}', space=sflag, size = 0x4, scoped, tag = 'scoped memory for tpu_custom_call.1']
    #allocation5 [shape = 's32[1]{0}', space=sflag, size = 0x4, scoped, tag = 'scoped memory for tpu_custom_call.1']
    #allocation6 [shape = 'u8[131072]{0}', space=vmem, size = 0x20000, scoped, tag = 'input window, operand 1, single buffered']
    #allocation7 [shape = 's32[1]{0}', space=sflag, size = 0x4, scoped, tag = 'scoped memory for tpu_custom_call.1']
    #allocation8 [shape = 'u8[4096]{0}', space=vmem, size = 0x1000, scoped, tag = 'output window, operand 0, single buffered']
    %8 = vsyncpa [#allocation4], 0
    %9 = vsyncpa [#allocation7], 0
    %10 = vsyncpa [#allocation5], 0
    // Predicated region
    $region2: #{tpu_custom_call.1} parent=1 // pred_check
      _
    $region3: #{tpu_custom_call.1} parent=1 // pred_check_branch
      %12 = sbr.rel (0) target = $region5
    $region4: #{tpu_custom_call.1} parent=1 // pred_region
      %s14 = ssub.s32 512, 512
      %15 = vsyncadd [#allocation4], %s14
      %s16 = sshll.u32 [#allocation3], 4
      %s17 = int_to_ptr.vmem [resolvable:$true] %s16
      %22 = dma.hbm_to_vmem [thread:$0]  %s0, 512, %s17, [#allocation4], 256, 256, 16
    $region5: #{tpu_custom_call.1} parent=1 // pred_fallthru
      _
    // Predicated region
    $region6: #{tpu_custom_call.1} parent=1 // pred_check
      _
    $region7: #{tpu_custom_call.1} parent=1 // pred_check_branch
      %24 = sbr.rel (0) target = $region9
    $region8: #{tpu_custom_call.1} parent=1 // pred_region
      %s26 = ssub.s32 4096, 4096
      %27 = vsyncadd [#allocation7], %s26
      %s28 = sshll.u32 [#allocation6], 4
      %s29 = int_to_ptr.vmem [resolvable:$true] %s28
      %34 = dma.hbm_to_vmem [thread:$0]  %s1, 4096, %s29, [#allocation7], 64, 64, 4
    $region9: #{tpu_custom_call.1} parent=1 // pred_fallthru
      _
    // Predicated region
    $region10: #{tpu_custom_call.1} parent=1 // pred_check
      _
    $region11: #{tpu_custom_call.1} parent=1 // pred_check_branch
      %36 = sbr.rel (0) target = $region13
    $region12: #{tpu_custom_call.1} parent=1 // pred_region
      _
    $region13: #{tpu_custom_call.1} parent=1 // pred_fallthru
      _
    // Predicated region
    $region14: #{tpu_custom_call.1} parent=1 // pred_check
      _
    $region15: #{tpu_custom_call.1} parent=1 // pred_check_branch
      %38 = sbr.rel (0) target = $region17
    $region16: #{tpu_custom_call.1} parent=1 // pred_region
      %39 = dma.done [#allocation4], 512
    $region17: #{tpu_custom_call.1} parent=1 // pred_fallthru
      _
    // Predicated region
    $region18: #{tpu_custom_call.1} parent=1 // pred_check
      _
    $region19: #{tpu_custom_call.1} parent=1 // pred_check_branch
      %41 = sbr.rel (0) target = $region21
    $region20: #{tpu_custom_call.1} parent=1 // pred_region
      %42 = dma.done [#allocation7], 4096
    $region21: #{tpu_custom_call.1} parent=1 // pred_fallthru
      _
    %p44 = scmp.eq.s32.totalorder 0, 0
    // Predicated region
    $region22: #{tpu_custom_call.1} parent=1 // pred_check
      %p45 = pneg %p44
    $region23: #{tpu_custom_call.1} parent=1 // pred_check_branch
      %47 = sbr.rel (%p45) target = $region25
    $region24: #{tpu_custom_call.1} parent=1 // pred_region
      %48 = vst [vmem:[#allocation2] sm:$0xff] 0.0
      %49 = vst [vmem:[#allocation2 + $0x8] sm:$0xff] 0.0
    $region25: #{tpu_custom_call.1} parent=1 // pred_fallthru
      _
    %v50 = vld [vmem:[#allocation2] sm:$0xff]
    %v51 = vld [vmem:[#allocation2 + $0x8] sm:$0xff]
    %v52 = vld [vmem:[#allocation3] sm:$0xff]
    %v53 = vld [vmem:[#allocation3 + $0x8] sm:$0xff]
    %v54 = vld [vmem:[#allocation3 + $0x10] sm:$0xff]
    %v55 = vld [vmem:[#allocation3 + $0x18] sm:$0xff]
    %v56 = vld [vmem:[#allocation6] sm:$0xf]
    %v57 = vld [vmem:[#allocation6 + $0x4] sm:$0xf]
    %v58 = vld [vmem:[#allocation6 + $0x8] sm:$0xf]
    %v59 = vld [vmem:[#allocation6 + $0xc] sm:$0xf]
    %v60 = vld [vmem:[#allocation6 + $0x10] sm:$0xf]
    %v61 = vld [vmem:[#allocation6 + $0x14] sm:$0xf]
    %v62 = vld [vmem:[#allocation6 + $0x18] sm:$0xf]
    %v63 = vld [vmem:[#allocation6 + $0x1c] sm:$0xf]
    %v64 = vld [vmem:[#allocation6 + $0x20] sm:$0xf]
    %v65 = vld [vmem:[#allocation6 + $0x24] sm:$0xf]
    %v66 = vld [vmem:[#allocation6 + $0x28] sm:$0xf]
    %v67 = vld [vmem:[#allocation6 + $0x2c] sm:$0xf]
    %v68 = vld [vmem:[#allocation6 + $0x30] sm:$0xf]
    %v69 = vld [vmem:[#allocation6 + $0x34] sm:$0xf]
    %v70 = vld [vmem:[#allocation6 + $0x38] sm:$0xf]
    %v71 = vld [vmem:[#allocation6 + $0x3c] sm:$0xf]
    %v72 = vld [vmem:[#allocation6 + $0x40] sm:$0xf]
    %v73 = vld [vmem:[#allocation6 + $0x44] sm:$0xf]
    %v74 = vld [vmem:[#allocation6 + $0x48] sm:$0xf]
    %v75 = vld [vmem:[#allocation6 + $0x4c] sm:$0xf]
    %v76 = vld [vmem:[#allocation6 + $0x50] sm:$0xf]
    %v77 = vld [vmem:[#allocation6 + $0x54] sm:$0xf]
    %v78 = vld [vmem:[#allocation6 + $0x58] sm:$0xf]
    %v79 = vld [vmem:[#allocation6 + $0x5c] sm:$0xf]
    %v80 = vld [vmem:[#allocation6 + $0x60] sm:$0xf]
    %v81 = vld [vmem:[#allocation6 + $0x64] sm:$0xf]
    %v82 = vld [vmem:[#allocation6 + $0x68] sm:$0xf]
    %v83 = vld [vmem:[#allocation6 + $0x6c] sm:$0xf]
    %v84 = vld [vmem:[#allocation6 + $0x70] sm:$0xf]
    %v85 = vld [vmem:[#allocation6 + $0x74] sm:$0xf]
    %v86 = vld [vmem:[#allocation6 + $0x78] sm:$0xf]
    %v87 = vld [vmem:[#allocation6 + $0x7c] sm:$0xf]
    %v88 = vld [vmem:[#allocation6 + $0x80] sm:$0xf]
    %v89 = vld [vmem:[#allocation6 + $0x84] sm:$0xf]
    %v90 = vld [vmem:[#allocation6 + $0x88] sm:$0xf]
    %v91 = vld [vmem:[#allocation6 + $0x8c] sm:$0xf]
    %v92 = vld [vmem:[#allocation6 + $0x90] sm:$0xf]
    %v93 = vld [vmem:[#allocation6 + $0x94] sm:$0xf]
    %v94 = vld [vmem:[#allocation6 + $0x98] sm:$0xf]
    %v95 = vld [vmem:[#allocation6 + $0x9c] sm:$0xf]
    %v96 = vld [vmem:[#allocation6 + $0xa0] sm:$0xf]
    %v97 = vld [vmem:[#allocation6 + $0xa4] sm:$0xf]
    %v98 = vld [vmem:[#allocation6 + $0xa8] sm:$0xf]
    %v99 = vld [vmem:[#allocation6 + $0xac] sm:$0xf]
    %v100 = vld [vmem:[#allocation6 + $0xb0] sm:$0xf]
    %v101 = vld [vmem:[#allocation6 + $0xb4] sm:$0xf]
    %v102 = vld [vmem:[#allocation6 + $0xb8] sm:$0xf]
    %v103 = vld [vmem:[#allocation6 + $0xbc] sm:$0xf]
    %v104 = vld [vmem:[#allocation6 + $0xc0] sm:$0xf]
    %v105 = vld [vmem:[#allocation6 + $0xc4] sm:$0xf]
    %v106 = vld [vmem:[#allocation6 + $0xc8] sm:$0xf]
    %v107 = vld [vmem:[#allocation6 + $0xcc] sm:$0xf]
    %v108 = vld [vmem:[#allocation6 + $0xd0] sm:$0xf]
    %v109 = vld [vmem:[#allocation6 + $0xd4] sm:$0xf]
    %v110 = vld [vmem:[#allocation6 + $0xd8] sm:$0xf]
    %v111 = vld [vmem:[#allocation6 + $0xdc] sm:$0xf]
    %v112 = vld [vmem:[#allocation6 + $0xe0] sm:$0xf]
    %v113 = vld [vmem:[#allocation6 + $0xe4] sm:$0xf]
    %v114 = vld [vmem:[#allocation6 + $0xe8] sm:$0xf]
    %v115 = vld [vmem:[#allocation6 + $0xec] sm:$0xf]
    %v116 = vld [vmem:[#allocation6 + $0xf0] sm:$0xf]
    %v117 = vld [vmem:[#allocation6 + $0xf4] sm:$0xf]
    %v118 = vld [vmem:[#allocation6 + $0xf8] sm:$0xf]
    %v119 = vld [vmem:[#allocation6 + $0xfc] sm:$0xf]
    %v124 = vunpack.c.l.b16 %v52
    %v125 = vunpack.c.h.b16 %v52
    %v126 = vunpack.c.l.b16 %v53
    %v127 = vunpack.c.h.b16 %v53
    %v128 = vunpack.c.l.b16 %v54
    %v129 = vunpack.c.h.b16 %v54
    %v130 = vunpack.c.l.b16 %v55
    %v131 = vunpack.c.h.b16 %v55
    %v132 = vpack.c.b16 %v128, %v124
    %v133 = vpack.c.b16 %v129, %v125
    %v134 = vpack.c.b16 %v130, %v126
    %v135 = vpack.c.b16 %v131, %v127
    %v204 = vunpack.c.l.b16 %v56
    %v205 = vunpack.c.l.b16 %v57
    %v206 = vunpack.c.l.b16 %v58
    %v207 = vunpack.c.l.b16 %v59
    %v208 = vunpack.c.l.b16 %v60
    %v209 = vunpack.c.l.b16 %v61
    %v210 = vunpack.c.l.b16 %v62
    %v211 = vunpack.c.l.b16 %v63
    %v212 = vunpack.c.l.b16 %v64
    %v213 = vunpack.c.l.b16 %v65
    %v214 = vunpack.c.l.b16 %v66
    %v215 = vunpack.c.l.b16 %v67
    %v216 = vunpack.c.l.b16 %v68
    %v217 = vunpack.c.l.b16 %v69
    %v218 = vunpack.c.l.b16 %v70
    %v219 = vunpack.c.l.b16 %v71
    %v220 = vunpack.c.l.b16 %v72
    %v221 = vunpack.c.l.b16 %v73
    %v222 = vunpack.c.l.b16 %v74
    %v223 = vunpack.c.l.b16 %v75
    %v224 = vunpack.c.l.b16 %v76
    %v225 = vunpack.c.l.b16 %v77
    %v226 = vunpack.c.l.b16 %v78
    %v227 = vunpack.c.l.b16 %v79
    %v228 = vunpack.c.l.b16 %v80
    %v229 = vunpack.c.l.b16 %v81
    %v230 = vunpack.c.l.b16 %v82
    %v231 = vunpack.c.l.b16 %v83
    %v232 = vunpack.c.l.b16 %v84
    %v233 = vunpack.c.l.b16 %v85
    %v234 = vunpack.c.l.b16 %v86
    %v235 = vunpack.c.l.b16 %v87
    %v236 = vunpack.c.l.b16 %v88
    %v237 = vunpack.c.l.b16 %v89
    %v238 = vunpack.c.l.b16 %v90
    %v239 = vunpack.c.l.b16 %v91
    %v240 = vunpack.c.l.b16 %v92
    %v241 = vunpack.c.l.b16 %v93
    %v242 = vunpack.c.l.b16 %v94
    %v243 = vunpack.c.l.b16 %v95
    %v244 = vunpack.c.l.b16 %v96
    %v245 = vunpack.c.l.b16 %v97
    %v246 = vunpack.c.l.b16 %v98
    %v247 = vunpack.c.l.b16 %v99
    %v248 = vunpack.c.l.b16 %v100
    %v249 = vunpack.c.l.b16 %v101
    %v250 = vunpack.c.l.b16 %v102
    %v251 = vunpack.c.l.b16 %v103
    %v252 = vunpack.c.l.b16 %v104
    %v253 = vunpack.c.l.b16 %v105
    %v254 = vunpack.c.l.b16 %v106
    %v255 = vunpack.c.l.b16 %v107
    %v256 = vunpack.c.l.b16 %v108
    %v257 = vunpack.c.l.b16 %v109
    %v258 = vunpack.c.l.b16 %v110
    %v259 = vunpack.c.l.b16 %v111
    %v260 = vunpack.c.l.b16 %v112
    %v261 = vunpack.c.l.b16 %v113
    %v262 = vunpack.c.l.b16 %v114
    %v263 = vunpack.c.l.b16 %v115
    %v264 = vunpack.c.l.b16 %v116
    %v265 = vunpack.c.l.b16 %v117
    %v266 = vunpack.c.l.b16 %v118
    %v267 = vunpack.c.l.b16 %v119
    %v268 = vpack.c.b16 %v205, %v204
    %v269 = vpack.c.b16 %v207, %v206
    %v270 = vpack.c.b16 %v209, %v208
    %v271 = vpack.c.b16 %v211, %v210
    %v272 = vpack.c.b16 %v213, %v212
    %v273 = vpack.c.b16 %v215, %v214
    %v274 = vpack.c.b16 %v217, %v216
    %v275 = vpack.c.b16 %v219, %v218
    %v276 = vpack.c.b16 %v221, %v220
    %v277 = vpack.c.b16 %v223, %v222
    %v278 = vpack.c.b16 %v225, %v224
    %v279 = vpack.c.b16 %v227, %v226
    %v280 = vpack.c.b16 %v229, %v228
    %v281 = vpack.c.b16 %v231, %v230
    %v282 = vpack.c.b16 %v233, %v232
    %v283 = vpack.c.b16 %v235, %v234
    %v284 = vpack.c.b16 %v237, %v236
    %v285 = vpack.c.b16 %v239, %v238
    %v286 = vpack.c.b16 %v241, %v240
    %v287 = vpack.c.b16 %v243, %v242
    %v288 = vpack.c.b16 %v245, %v244
    %v289 = vpack.c.b16 %v247, %v246
    %v290 = vpack.c.b16 %v249, %v248
    %v291 = vpack.c.b16 %v251, %v250
    %v292 = vpack.c.b16 %v253, %v252
    %v293 = vpack.c.b16 %v255, %v254
    %v294 = vpack.c.b16 %v257, %v256
    %v295 = vpack.c.b16 %v259, %v258
    %v296 = vpack.c.b16 %v261, %v260
    %v297 = vpack.c.b16 %v263, %v262
    %v298 = vpack.c.b16 %v265, %v264
    %v299 = vpack.c.b16 %v267, %v266
    %332 = vmatprep.subr.bf16.mxu0 0
    %333 = vmatpush1.bf16.msra.mxu0 %v275
    %334 = vmatprep.subr.bf16.mxu0 0
    %335 = vmatpush1.bf16.msra.mxu0 %v274
    %336 = vmatprep.subr.bf16.mxu0 0
    %337 = vmatpush1.bf16.msra.mxu0 %v273
    %338 = vmatprep.subr.bf16.mxu0 0
    %339 = vmatpush1.bf16.msra.mxu0 %v272
    %340 = vmatprep.subr.bf16.mxu0 0
    %341 = vmatpush1.bf16.msra.mxu0 %v271
    %342 = vmatprep.subr.bf16.mxu0 0
    %343 = vmatpush1.bf16.msra.mxu0 %v270
    %344 = vmatprep.subr.bf16.mxu0 0
    %345 = vmatpush1.bf16.msra.mxu0 %v269
    %346 = vmatprep.subr.bf16.mxu0 0
    %347 = vmatpush1.bf16.msra.mxu0 %v268
    %348 = vmatprep.subr.bf16.mxu0 0
    %349 = vmatpush2.bf16.msra.mxu0 %v283
    %350 = vmatprep.subr.bf16.mxu0 0
    %351 = vmatpush2.bf16.msra.mxu0 %v282
    %352 = vmatprep.subr.bf16.mxu0 0
    %353 = vmatpush2.bf16.msra.mxu0 %v281
    %354 = vmatprep.subr.bf16.mxu0 0
    %355 = vmatpush2.bf16.msra.mxu0 %v280
    %356 = vmatprep.subr.bf16.mxu0 0
    %357 = vmatpush2.bf16.msra.mxu0 %v279
    %358 = vmatprep.subr.bf16.mxu0 0
    %359 = vmatpush2.bf16.msra.mxu0 %v278
    %360 = vmatprep.subr.bf16.mxu0 0
    %361 = vmatpush2.bf16.msra.mxu0 %v277
    %362 = vmatprep.subr.bf16.mxu0 0
    %363 = vmatpush2.bf16.msra.mxu0 %v276
    %364 = vmatprep.mubr.bf16.mxu0 %v133
    %365 = vmatmul.mubr.bf16.gmra.mxu0 %v132
    %v366 = vpop.f32.mrf.mxu0
    %v367 = vadd.f32 0.0, %v366
    %v368 = vpop.f32.mrf.mxu0
    %v369 = vpop.f32.mrf.mxu0
    %v370 = vadd.f32 0.0, %v369
    %v371 = vpop.f32.mrf.mxu0
    %372 = vdwg.mxu0
    %373 = vmatprep.subr.bf16.mxu0 0
    %374 = vmatpush1.bf16.msra.mxu0 %v291
    %375 = vmatprep.subr.bf16.mxu0 0
    %376 = vmatpush1.bf16.msra.mxu0 %v290
    %377 = vmatprep.subr.bf16.mxu0 0
    %378 = vmatpush1.bf16.msra.mxu0 %v289
    %379 = vmatprep.subr.bf16.mxu0 0
    %380 = vmatpush1.bf16.msra.mxu0 %v288
    %381 = vmatprep.subr.bf16.mxu0 0
    %382 = vmatpush1.bf16.msra.mxu0 %v287
    %383 = vmatprep.subr.bf16.mxu0 0
    %384 = vmatpush1.bf16.msra.mxu0 %v286
    %385 = vmatprep.subr.bf16.mxu0 0
    %386 = vmatpush1.bf16.msra.mxu0 %v285
    %387 = vmatprep.subr.bf16.mxu0 0
    %388 = vmatpush1.bf16.msra.mxu0 %v284
    %389 = vmatprep.subr.bf16.mxu0 0
    %390 = vmatpush2.bf16.msra.mxu0 %v299
    %391 = vmatprep.subr.bf16.mxu0 0
    %392 = vmatpush2.bf16.msra.mxu0 %v298
    %393 = vmatprep.subr.bf16.mxu0 0
    %394 = vmatpush2.bf16.msra.mxu0 %v297
    %395 = vmatprep.subr.bf16.mxu0 0
    %396 = vmatpush2.bf16.msra.mxu0 %v296
    %397 = vmatprep.subr.bf16.mxu0 0
    %398 = vmatpush2.bf16.msra.mxu0 %v295
    %399 = vmatprep.subr.bf16.mxu0 0
    %400 = vmatpush2.bf16.msra.mxu0 %v294
    %401 = vmatprep.subr.bf16.mxu0 0
    %402 = vmatpush2.bf16.msra.mxu0 %v293
    %403 = vmatprep.subr.bf16.mxu0 0
    %404 = vmatpush2.bf16.msra.mxu0 %v292
    %405 = vmatprep.mubr.bf16.mxu0 %v135
    %406 = vmatmul.mubr.bf16.gmra.mxu0 %v134
    %v407 = vpop.f32.mrf.mxu0
    %v408 = vadd.f32 %v367, %v407
    %v409 = vpop.f32.mrf.mxu0
    %v410 = vpop.f32.mrf.mxu0
    %v411 = vadd.f32 %v370, %v410
    %v412 = vpop.f32.mrf.mxu0
    %413 = vdwg.mxu0
    %v414 = vadd.f32 %v50, %v408
    %v415 = vadd.f32 %v51, %v411
    %416 = vst [vmem:[#allocation2] sm:$0xff] %v414
    %417 = vst [vmem:[#allocation2 + $0x8] sm:$0xff] %v415
    // Predicated region
    $region26: #{tpu_custom_call.1} parent=1 // pred_check
      %p418 = pneg %p44
    $region27: #{tpu_custom_call.1} parent=1 // pred_check_branch
      %420 = sbr.rel (%p418) target = $region29
    $region28: #{tpu_custom_call.1} parent=1 // pred_region
      %v421 = vld [vmem:[#allocation2] sm:$0xff]
      %v422 = vld [vmem:[#allocation2 + $0x8] sm:$0xff]
      %v423 = vld [vmem:[%s2] sm:$0x1]
      %v425 = vlaneseq
      %v426 = vshrl.u32 %v425, 7
      %v427 = vsub.s32 0, %v426
      %v428 = vrot.slane %v423, %v427
      %v430 = vadd.f32 %v421, %v428
      %v431 = vadd.f32 %v422, %v428
      %v432 = vpack.c.bf16 %v431, %v430
      %v434 = vunpack.c.l.b16 %v432
      %v435 = vunpack.c.h.b16 %v432
      %v436 = vpack.c.b16 %v434, %v434
      %v437 = vpack.c.b16 %v435, %v435
      %440 = vst [vmem:[#allocation8] sm:$0xf] %v436
      %441 = vst [vmem:[#allocation8 + $0x4] sm:$0xf] %v437
    $region29: #{tpu_custom_call.1} parent=1 // pred_fallthru
      _
    // Predicated region
    $region30: #{tpu_custom_call.1} parent=1 // pred_check
      _
    $region31: #{tpu_custom_call.1} parent=1 // pred_check_branch
      %443 = sbr.rel (0) target = $region33
    $region32: #{tpu_custom_call.1} parent=1 // pred_region
      %s445 = ssub.s32 128, 128
      %446 = vsyncadd [#allocation5], %s445
      %s447 = sshll.u32 [#allocation8], 4
      %s448 = int_to_ptr.vmem [resolvable:$true] %s447
      %453 = dma.vmem_to_hbm [thread:$0]  %s448, 128, %s3, [#allocation5], 64, 64, 4
    $region33: #{tpu_custom_call.1} parent=1 // pred_fallthru
      _
    // Predicated region
    $region34: #{tpu_custom_call.1} parent=1 // pred_check
      _
    $region35: #{tpu_custom_call.1} parent=1 // pred_check_branch
      %455 = sbr.rel (0) target = $region37
    $region36: #{tpu_custom_call.1} parent=1 // pred_region
      %456 = dma.done [#allocation5], 128
    $region37: #{tpu_custom_call.1} parent=1 // pred_fallthru
      _
    %457 = vsyncpa [#allocation4], 1
    %458 = vsyncpa [#allocation7], 1
    %459 = vsyncpa [#allocation5], 1

</llo_original>
